<compile_context>
chip_gen: v7x
topology: tpu7x:2x2x1
jax: 0.10.0
libtpu: 0.0.40
codegen_flags: <defaults>
</compile_context>

<pallas_src>
import math
import functools

import jax
import jax.numpy as jnp
import numpy as np
from jax import lax
from jax.experimental import pallas as pl
from jax.experimental.pallas import tpu as pltpu


def _attention_kernel(x_ref, w_ref, b_ref, o_ref, q_s, k_s, v_s, *, num_heads):
    # x_ref : (1, S, E)   bf16 — one batch row of activations
    # w_ref : (E, 3E)     bf16 — fused [Wq^T * scale | Wk^T | Wv^T]
    # b_ref : (1, 3E)     f32  — fused [bq * scale | bk | bv]
    # o_ref : (1, S, E)   f32  — merged-heads output (torch transpose(1,2).flatten(2) layout)
    # q_s/k_s/v_s : (H, S, d) f32 VMEM scratch — head-major operand staging
    S, E = x_ref.shape[1], x_ref.shape[2]
    H = num_heads
    d = E // H

    x = x_ref[0]                                                        # (S, E) bf16

    # Fused QKV projection: bf16 operands on the MXU, f32 accumulation, f32 bias add.
    qkv = jnp.dot(x, w_ref[...], preferred_element_type=jnp.float32) + b_ref[...]   # (S, 3E) f32

    # Stage per-head slices into head-major (H, S, d) scratch so the score / PV
    # contractions below run as one head-batched dot_general each.
    for h in range(H):                       # H is small & static; unrolled is fine here.
        lo = h * d
        q_s[h] = qkv[:, 0 * E + lo:0 * E + lo + d]
        k_s[h] = qkv[:, 1 * E + lo:1 * E + lo + d]
        v_s[h] = qkv[:, 2 * E + lo:2 * E + lo + d]

    q3 = q_s[...].astype(jnp.bfloat16)       # (H, S, d), 1/sqrt(d) already folded into W_q
    k3 = k_s[...].astype(jnp.bfloat16)
    v3 = v_s[...].astype(jnp.bfloat16)

    # Head-batched scores: (H, S, S), f32 accumulation.
    s = lax.dot_general(q3, k3, (((2,), (2,)), ((0,), (0,))),
                        preferred_element_type=jnp.float32)

    # Numerically stable softmax in f32 (elementwise math stays f32 — v5e has no bf16 VPU/EUP).
    s = s - jnp.max(s, axis=-1, keepdims=True)
    p = jnp.exp(s)
    l = jnp.sum(p, axis=-1, keepdims=True)                               # (H, S, 1)

    # Unnormalized PV matmul (bf16 operands, f32 accumulation), then normalize with one
    # EUP reciprocal over (H, S, d) instead of rescaling the (H, S, S) probabilities.
    out3 = lax.dot_general(p.astype(jnp.bfloat16), v3, (((2,), (1,)), ((0,), (0,))),
                           preferred_element_type=jnp.float32)           # (H, S, d)
    out3 = out3 * pl.reciprocal(l, approx=True)

    # Merge heads directly into the lane-dense (S, E) output tile — already the torch
    # `transpose(1, 2).flatten(2)` layout, no concat and no post-call transpose.
    for h in range(H):
        lo = h * d
        o_ref[0, :, lo:lo + d] = out3[h].astype(o_ref.dtype)


@functools.partial(jax.jit, static_argnames=("num_heads",))
def attention_forward(x, Wq, bq, Wk, bk, Wv, bv, *, num_heads):
    """Equivalent of Attention.forward(x).

    x  : (B, S, E) float32
    W* : (E, E) torch nn.Linear weight layout (out_features, in_features)
    b* : (E,)   bias
    returns (B, S, E) float32
    """
    B, S, E = x.shape
    assert E % num_heads == 0
    d = E // num_heads
    scale = 1.0 / math.sqrt(d)

    # torch Linear: y = x @ W^T + b.  Fuse the three projections column-wise and fold the
    # 1/sqrt(d) softmax scale into the Q weights/bias.  Under jit this concat/cast is a
    # one-time transform on the weights, not per-kernel-step work.
    w_fused = jnp.concatenate([Wq.T * scale, Wk.T, Wv.T], axis=1).astype(jnp.bfloat16)  # (E, 3E)
    b_fused = jnp.concatenate([bq * scale, bk, bv]).reshape(1, 3 * E)                   # (1, 3E) f32

    kernel = functools.partial(_attention_kernel, num_heads=num_heads)

    out = pl.pallas_call(
        kernel,
        out_shape=jax.ShapeDtypeStruct((B, S, E), jnp.float32),
        grid_spec=pltpu.PrefetchScalarGridSpec(
            num_scalar_prefetch=0,
            grid=(B,),
            in_specs=[
                pl.BlockSpec((1, S, E), lambda b: (b, 0, 0)),       # x[b]  (bf16)
                pl.BlockSpec((E, 3 * E), lambda b: (0, 0)),         # fused weight (grid-invariant)
                pl.BlockSpec((1, 3 * E), lambda b: (0, 0)),         # fused bias  (grid-invariant)
            ],
            out_specs=pl.BlockSpec((1, S, E), lambda b: (b, 0, 0)),
            scratch_shapes=[
                pltpu.VMEM((num_heads, S, d), jnp.float32),         # q staging
                pltpu.VMEM((num_heads, S, d), jnp.float32),         # k staging
                pltpu.VMEM((num_heads, S, d), jnp.float32),         # v staging
            ],
        ),
        compiler_params=pltpu.CompilerParams(
            dimension_semantics=("parallel",),
            # 48 MiB: headroom under v7x's 64 MiB physical VMEM, well under v5e/v6e's 128 MiB.
            vmem_limit_bytes=48 * 1024 * 1024),
    )(x.astype(jnp.bfloat16), w_fused, b_fused)
    return out


def _reference(x, Wq, bq, Wk, bk, Wv, bv, num_heads):
    """Pure-JAX f32 reference matching the PyTorch module exactly."""
    B, S, E = x.shape
    qkv = E // num_heads

    def proj(W, b):
        y = x @ W.T + b                                                # (B, S, E)
        return y.reshape(B, S, num_heads, qkv).transpose(0, 2, 1, 3)   # (B, H, S, qkv)

    Q, K, V = proj(Wq, bq), proj(Wk, bk), proj(Wv, bv)
    score = jnp.einsum("bhqd,bhkd->bhqk", Q, K) / np.sqrt(qkv)
    score = jax.nn.softmax(score, axis=-1)
    out = jnp.einsum("bhqk,bhkd->bhqd", score, V)
    return out.transpose(0, 2, 1, 3).reshape(B, S, E)


if __name__ == "__main__":
    batch_size = 2
    seq_len = 8
    embedding_dim = 32
    num_heads = 4

    key = jax.random.PRNGKey(0)
    kx, kq, kbq, kk, kbk, kv, kbv = jax.random.split(key, 7)

    x = jax.random.normal(kx, (batch_size, seq_len, embedding_dim), dtype=jnp.float32)

    # Deterministic parameter init (shapes from nn.Linear(embedding_dim, embedding_dim)).
    bound = 1.0 / math.sqrt(embedding_dim)
    Wq = jax.random.uniform(kq, (embedding_dim, embedding_dim), jnp.float32, -bound, bound)
    bq = jax.random.uniform(kbq, (embedding_dim,), jnp.float32, -bound, bound)
    Wk = jax.random.uniform(kk, (embedding_dim, embedding_dim), jnp.float32, -bound, bound)
    bk = jax.random.uniform(kbk, (embedding_dim,), jnp.float32, -bound, bound)
    Wv = jax.random.uniform(kv, (embedding_dim, embedding_dim), jnp.float32, -bound, bound)
    bv = jax.random.uniform(kbv, (embedding_dim,), jnp.float32, -bound, bound)

    out = attention_forward(x, Wq, bq, Wk, bk, Wv, bv, num_heads=num_heads)
    out = jax.block_until_ready(out)

    ref = _reference(x, Wq, bq, Wk, bk, Wv, bv, num_heads)
    # Tolerance accounts for bf16 MXU operands (reference is pure f32) and the EUP
    # approximate reciprocal in the softmax normalization.
    np.testing.assert_allclose(np.asarray(out), np.asarray(ref), rtol=3e-2, atol=3e-2)

    assert out.shape == (batch_size, seq_len, embedding_dim)
    print("KERNEL_OK")
</pallas_src>

<mosaic_0001>
module attributes {stable_mosaic.version = 11 : i64} {
  func.func @_attention_kernel(%arg0: i32, %arg1: memref<1x8x32xbf16, #tpu.memory_space<vmem>>, %arg2: memref<32x96xbf16, #tpu.memory_space<vmem>>, %arg3: memref<1x96xf32, #tpu.memory_space<vmem>>, %arg4: memref<1x8x32xf32, #tpu.memory_space<vmem>>, %arg5: memref<4x8x8xf32, #tpu.memory_space<vmem>>, %arg6: memref<4x8x8xf32, #tpu.memory_space<vmem>>, %arg7: memref<4x8x8xf32, #tpu.memory_space<vmem>>) attributes {dimension_semantics = [#tpu.dimension_semantics<parallel>], iteration_bounds = array<i64: 2>, scalar_prefetch = 0 : i64, scratch_operands = 3 : i64, tpu.core_type = #tpu.core_type<tc>, window_params = [{transform_indices = @transform_0, window_bounds = array<i64: 1, 8, 32>}, {pipeline_mode = #tpu.pipeline_mode<synchronous>, transform_indices = @transform_1, window_bounds = array<i64: 32, 96>}, {pipeline_mode = #tpu.pipeline_mode<synchronous>, transform_indices = @transform_2, window_bounds = array<i64: 1, 96>}, {transform_indices = @transform_3, window_bounds = array<i64: 1, 8, 32>}]} {
    %c0 = arith.constant 0 : index
    %c0_0 = arith.constant 0 : index
    %c0_1 = arith.constant 0 : index
    %0 = vector.load %arg1[%c0, %c0_0, %c0_1] : memref<1x8x32xbf16, #tpu.memory_space<vmem>>, vector<1x8x32xbf16>
    %1 = vector.shape_cast %0 : vector<1x8x32xbf16> to vector<8x32xbf16>
    %c0_2 = arith.constant 0 : index
    %c0_3 = arith.constant 0 : index
    %2 = vector.load %arg2[%c0_2, %c0_3] : memref<32x96xbf16, #tpu.memory_space<vmem>>, vector<32x96xbf16>
    %cst = arith.constant dense<0.000000e+00> : vector<8x96xf32>
    %3 = tpu.matmul %1, %2, %cst {dimension_numbers = #tpu.dot_dimension_numbers<[1], [0], [0], [1], [0, 0, 1, 1], [], []>} : vector<8x32xbf16>, vector<32x96xbf16>, vector<8x96xf32> -> vector<8x96xf32>
    %c0_4 = arith.constant 0 : index
    %c0_5 = arith.constant 0 : index
    %4 = vector.load %arg3[%c0_4, %c0_5] : memref<1x96xf32, #tpu.memory_space<vmem>>, vector<1x96xf32>
    %5 = vector.broadcast %4 : vector<1x96xf32> to vector<8x96xf32>
    %6 = arith.addf %3, %5 : vector<8x96xf32>
    %7 = vector.extract_strided_slice %6 {offsets = [0, 0], sizes = [8, 8], strides = [1, 1]} : vector<8x96xf32> to vector<8x8xf32>
    %c0_6 = arith.constant 0 : index
    %c0_7 = arith.constant 0 : index
    %c0_8 = arith.constant 0 : index
    %8 = vector.load %arg5[%c0_6, %c0_7, %c0_8] : memref<4x8x8xf32, #tpu.memory_space<vmem>>, vector<1x8x8xf32>
    %9 = vector.shape_cast %8 : vector<1x8x8xf32> to vector<8x8xf32>
    %10 = vector.shape_cast %7 : vector<8x8xf32> to vector<1x8x8xf32>
    tpu.vector_store %arg5[%c0_6, %c0_7, %c0_8], %10 {strides = array<i32>} : memref<4x8x8xf32, #tpu.memory_space<vmem>>, vector<1x8x8xf32>,
    %11 = vector.extract_strided_slice %6 {offsets = [0, 32], sizes = [8, 8], strides = [1, 1]} : vector<8x96xf32> to vector<8x8xf32>
    %c0_9 = arith.constant 0 : index
    %c0_10 = arith.constant 0 : index
    %c0_11 = arith.constant 0 : index
    %12 = vector.load %arg6[%c0_9, %c0_10, %c0_11] : memref<4x8x8xf32, #tpu.memory_space<vmem>>, vector<1x8x8xf32>
    %13 = vector.shape_cast %12 : vector<1x8x8xf32> to vector<8x8xf32>
    %14 = vector.shape_cast %11 : vector<8x8xf32> to vector<1x8x8xf32>
    tpu.vector_store %arg6[%c0_9, %c0_10, %c0_11], %14 {strides = array<i32>} : memref<4x8x8xf32, #tpu.memory_space<vmem>>, vector<1x8x8xf32>,
    %15 = vector.extract_strided_slice %6 {offsets = [0, 64], sizes = [8, 8], strides = [1, 1]} : vector<8x96xf32> to vector<8x8xf32>
    %c0_12 = arith.constant 0 : index
    %c0_13 = arith.constant 0 : index
    %c0_14 = arith.constant 0 : index
    %16 = vector.load %arg7[%c0_12, %c0_13, %c0_14] : memref<4x8x8xf32, #tpu.memory_space<vmem>>, vector<1x8x8xf32>
    %17 = vector.shape_cast %16 : vector<1x8x8xf32> to vector<8x8xf32>
    %18 = vector.shape_cast %15 : vector<8x8xf32> to vector<1x8x8xf32>
    tpu.vector_store %arg7[%c0_12, %c0_13, %c0_14], %18 {strides = array<i32>} : memref<4x8x8xf32, #tpu.memory_space<vmem>>, vector<1x8x8xf32>,
    %19 = vector.extract_strided_slice %6 {offsets = [0, 8], sizes = [8, 8], strides = [1, 1]} : vector<8x96xf32> to vector<8x8xf32>
    %c1 = arith.constant 1 : index
    %c0_15 = arith.constant 0 : index
    %c0_16 = arith.constant 0 : index
    %20 = vector.load %arg5[%c1, %c0_15, %c0_16] : memref<4x8x8xf32, #tpu.memory_space<vmem>>, vector<1x8x8xf32>
    %21 = vector.shape_cast %20 : vector<1x8x8xf32> to vector<8x8xf32>
    %22 = vector.shape_cast %19 : vector<8x8xf32> to vector<1x8x8xf32>
    tpu.vector_store %arg5[%c1, %c0_15, %c0_16], %22 {strides = array<i32>} : memref<4x8x8xf32, #tpu.memory_space<vmem>>, vector<1x8x8xf32>,
    %23 = vector.extract_strided_slice %6 {offsets = [0, 40], sizes = [8, 8], strides = [1, 1]} : vector<8x96xf32> to vector<8x8xf32>
    %c1_17 = arith.constant 1 : index
    %c0_18 = arith.constant 0 : index
    %c0_19 = arith.constant 0 : index
    %24 = vector.load %arg6[%c1_17, %c0_18, %c0_19] : memref<4x8x8xf32, #tpu.memory_space<vmem>>, vector<1x8x8xf32>
    %25 = vector.shape_cast %24 : vector<1x8x8xf32> to vector<8x8xf32>
    %26 = vector.shape_cast %23 : vector<8x8xf32> to vector<1x8x8xf32>
    tpu.vector_store %arg6[%c1_17, %c0_18, %c0_19], %26 {strides = array<i32>} : memref<4x8x8xf32, #tpu.memory_space<vmem>>, vector<1x8x8xf32>,
    %27 = vector.extract_strided_slice %6 {offsets = [0, 72], sizes = [8, 8], strides = [1, 1]} : vector<8x96xf32> to vector<8x8xf32>
    %c1_20 = arith.constant 1 : index
    %c0_21 = arith.constant 0 : index
    %c0_22 = arith.constant 0 : index
    %28 = vector.load %arg7[%c1_20, %c0_21, %c0_22] : memref<4x8x8xf32, #tpu.memory_space<vmem>>, vector<1x8x8xf32>
    %29 = vector.shape_cast %28 : vector<1x8x8xf32> to vector<8x8xf32>
    %30 = vector.shape_cast %27 : vector<8x8xf32> to vector<1x8x8xf32>
    tpu.vector_store %arg7[%c1_20, %c0_21, %c0_22], %30 {strides = array<i32>} : memref<4x8x8xf32, #tpu.memory_space<vmem>>, vector<1x8x8xf32>,
    %31 = vector.extract_strided_slice %6 {offsets = [0, 16], sizes = [8, 8], strides = [1, 1]} : vector<8x96xf32> to vector<8x8xf32>
    %c2 = arith.constant 2 : index
    %c0_23 = arith.constant 0 : index
    %c0_24 = arith.constant 0 : index
    %32 = vector.load %arg5[%c2, %c0_23, %c0_24] : memref<4x8x8xf32, #tpu.memory_space<vmem>>, vector<1x8x8xf32>
    %33 = vector.shape_cast %32 : vector<1x8x8xf32> to vector<8x8xf32>
    %34 = vector.shape_cast %31 : vector<8x8xf32> to vector<1x8x8xf32>
    tpu.vector_store %arg5[%c2, %c0_23, %c0_24], %34 {strides = array<i32>} : memref<4x8x8xf32, #tpu.memory_space<vmem>>, vector<1x8x8xf32>,
    %35 = vector.extract_strided_slice %6 {offsets = [0, 48], sizes = [8, 8], strides = [1, 1]} : vector<8x96xf32> to vector<8x8xf32>
    %c2_25 = arith.constant 2 : index
    %c0_26 = arith.constant 0 : index
    %c0_27 = arith.constant 0 : index
    %36 = vector.load %arg6[%c2_25, %c0_26, %c0_27] : memref<4x8x8xf32, #tpu.memory_space<vmem>>, vector<1x8x8xf32>
    %37 = vector.shape_cast %36 : vector<1x8x8xf32> to vector<8x8xf32>
    %38 = vector.shape_cast %35 : vector<8x8xf32> to vector<1x8x8xf32>
    tpu.vector_store %arg6[%c2_25, %c0_26, %c0_27], %38 {strides = array<i32>} : memref<4x8x8xf32, #tpu.memory_space<vmem>>, vector<1x8x8xf32>,
    %39 = vector.extract_strided_slice %6 {offsets = [0, 80], sizes = [8, 8], strides = [1, 1]} : vector<8x96xf32> to vector<8x8xf32>
    %c2_28 = arith.constant 2 : index
    %c0_29 = arith.constant 0 : index
    %c0_30 = arith.constant 0 : index
    %40 = vector.load %arg7[%c2_28, %c0_29, %c0_30] : memref<4x8x8xf32, #tpu.memory_space<vmem>>, vector<1x8x8xf32>
    %41 = vector.shape_cast %40 : vector<1x8x8xf32> to vector<8x8xf32>
    %42 = vector.shape_cast %39 : vector<8x8xf32> to vector<1x8x8xf32>
    tpu.vector_store %arg7[%c2_28, %c0_29, %c0_30], %42 {strides = array<i32>} : memref<4x8x8xf32, #tpu.memory_space<vmem>>, vector<1x8x8xf32>,
    %43 = vector.extract_strided_slice %6 {offsets = [0, 24], sizes = [8, 8], strides = [1, 1]} : vector<8x96xf32> to vector<8x8xf32>
    %c3 = arith.constant 3 : index
    %c0_31 = arith.constant 0 : index
    %c0_32 = arith.constant 0 : index
    %44 = vector.load %arg5[%c3, %c0_31, %c0_32] : memref<4x8x8xf32, #tpu.memory_space<vmem>>, vector<1x8x8xf32>
    %45 = vector.shape_cast %44 : vector<1x8x8xf32> to vector<8x8xf32>
    %46 = vector.shape_cast %43 : vector<8x8xf32> to vector<1x8x8xf32>
    tpu.vector_store %arg5[%c3, %c0_31, %c0_32], %46 {strides = array<i32>} : memref<4x8x8xf32, #tpu.memory_space<vmem>>, vector<1x8x8xf32>,
    %47 = vector.extract_strided_slice %6 {offsets = [0, 56], sizes = [8, 8], strides = [1, 1]} : vector<8x96xf32> to vector<8x8xf32>
    %c3_33 = arith.constant 3 : index
    %c0_34 = arith.constant 0 : index
    %c0_35 = arith.constant 0 : index
    %48 = vector.load %arg6[%c3_33, %c0_34, %c0_35] : memref<4x8x8xf32, #tpu.memory_space<vmem>>, vector<1x8x8xf32>
    %49 = vector.shape_cast %48 : vector<1x8x8xf32> to vector<8x8xf32>
    %50 = vector.shape_cast %47 : vector<8x8xf32> to vector<1x8x8xf32>
    tpu.vector_store %arg6[%c3_33, %c0_34, %c0_35], %50 {strides = array<i32>} : memref<4x8x8xf32, #tpu.memory_space<vmem>>, vector<1x8x8xf32>,
    %51 = vector.extract_strided_slice %6 {offsets = [0, 88], sizes = [8, 8], strides = [1, 1]} : vector<8x96xf32> to vector<8x8xf32>
    %c3_36 = arith.constant 3 : index
    %c0_37 = arith.constant 0 : index
    %c0_38 = arith.constant 0 : index
    %52 = vector.load %arg7[%c3_36, %c0_37, %c0_38] : memref<4x8x8xf32, #tpu.memory_space<vmem>>, vector<1x8x8xf32>
    %53 = vector.shape_cast %52 : vector<1x8x8xf32> to vector<8x8xf32>
    %54 = vector.shape_cast %51 : vector<8x8xf32> to vector<1x8x8xf32>
    tpu.vector_store %arg7[%c3_36, %c0_37, %c0_38], %54 {strides = array<i32>} : memref<4x8x8xf32, #tpu.memory_space<vmem>>, vector<1x8x8xf32>,
    %c0_39 = arith.constant 0 : index
    %c0_40 = arith.constant 0 : index
    %c0_41 = arith.constant 0 : index
    %55 = vector.load %arg5[%c0_39, %c0_40, %c0_41] : memref<4x8x8xf32, #tpu.memory_space<vmem>>, vector<4x8x8xf32>
    %56 = arith.truncf %55 : vector<4x8x8xf32> to vector<4x8x8xbf16>
    %c0_42 = arith.constant 0 : index
    %c0_43 = arith.constant 0 : index
    %c0_44 = arith.constant 0 : index
    %57 = vector.load %arg6[%c0_42, %c0_43, %c0_44] : memref<4x8x8xf32, #tpu.memory_space<vmem>>, vector<4x8x8xf32>
    %58 = arith.truncf %57 : vector<4x8x8xf32> to vector<4x8x8xbf16>
    %c0_45 = arith.constant 0 : index
    %c0_46 = arith.constant 0 : index
    %c0_47 = arith.constant 0 : index
    %59 = vector.load %arg7[%c0_45, %c0_46, %c0_47] : memref<4x8x8xf32, #tpu.memory_space<vmem>>, vector<4x8x8xf32>
    %60 = arith.truncf %59 : vector<4x8x8xf32> to vector<4x8x8xbf16>
    %cst_48 = arith.constant dense<0.000000e+00> : vector<4x8x8xf32>
    %61 = tpu.matmul %56, %58, %cst_48 {dimension_numbers = #tpu.dot_dimension_numbers<[2], [2], [1], [1], [0, 0, 0, 1, 1, 1], [0], [0]>} : vector<4x8x8xbf16>, vector<4x8x8xbf16>, vector<4x8x8xf32> -> vector<4x8x8xf32>
    %cst_49 = arith.constant dense<0xFF800000> : vector<4x8xf32>
    %62 = vector.multi_reduction <maximumf>, %61, %cst_49 [2] : vector<4x8x8xf32> to vector<4x8xf32>
    %63 = vector.shape_cast %62 : vector<4x8xf32> to vector<4x8x1xf32>
    %64 = vector.broadcast %63 : vector<4x8x1xf32> to vector<4x8x8xf32>
    %65 = arith.subf %61, %64 : vector<4x8x8xf32>
    %66 = math.exp %65 : vector<4x8x8xf32>
    %cst_50 = arith.constant dense<0.000000e+00> : vector<4x8xf32>
    %67 = vector.multi_reduction <add>, %66, %cst_50 [2] : vector<4x8x8xf32> to vector<4x8xf32>
    %68 = vector.shape_cast %67 : vector<4x8xf32> to vector<4x8x1xf32>
    %69 = arith.truncf %66 : vector<4x8x8xf32> to vector<4x8x8xbf16>
    %cst_51 = arith.constant dense<0.000000e+00> : vector<4x8x8xf32>
    %70 = tpu.matmul %69, %60, %cst_51 {dimension_numbers = #tpu.dot_dimension_numbers<[2], [1], [1], [2], [0, 0, 0, 1, 1, 2], [0], [0]>} : vector<4x8x8xbf16>, vector<4x8x8xbf16>, vector<4x8x8xf32> -> vector<4x8x8xf32>
    %71 = tpu.reciprocal %68 {approx = true} : vector<4x8x1xf32> -> vector<4x8x1xf32>
    %72 = vector.broadcast %71 : vector<4x8x1xf32> to vector<4x8x8xf32>
    %73 = arith.mulf %70, %72 : vector<4x8x8xf32>
    %74 = vector.extract_strided_slice %73 {offsets = [0, 0, 0], sizes = [1, 8, 8], strides = [1, 1, 1]} : vector<4x8x8xf32> to vector<1x8x8xf32>
    %75 = vector.shape_cast %74 : vector<1x8x8xf32> to vector<8x8xf32>
    %c0_52 = arith.constant 0 : index
    %c0_53 = arith.constant 0 : index
    %c0_54 = arith.constant 0 : index
    %76 = vector.load %arg4[%c0_52, %c0_53, %c0_54] : memref<1x8x32xf32, #tpu.memory_space<vmem>>, vector<1x8x8xf32>
    %77 = vector.shape_cast %76 : vector<1x8x8xf32> to vector<8x8xf32>
    %78 = vector.shape_cast %75 : vector<8x8xf32> to vector<1x8x8xf32>
    tpu.vector_store %arg4[%c0_52, %c0_53, %c0_54], %78 {strides = array<i32>} : memref<1x8x32xf32, #tpu.memory_space<vmem>>, vector<1x8x8xf32>,
    %79 = vector.extract_strided_slice %73 {offsets = [1, 0, 0], sizes = [1, 8, 8], strides = [1, 1, 1]} : vector<4x8x8xf32> to vector<1x8x8xf32>
    %80 = vector.shape_cast %79 : vector<1x8x8xf32> to vector<8x8xf32>
    %c0_55 = arith.constant 0 : index
    %c0_56 = arith.constant 0 : index
    %c8 = arith.constant 8 : index
    %81 = vector.load %arg4[%c0_55, %c0_56, %c8] : memref<1x8x32xf32, #tpu.memory_space<vmem>>, vector<1x8x8xf32>
    %82 = vector.shape_cast %81 : vector<1x8x8xf32> to vector<8x8xf32>
    %83 = vector.shape_cast %80 : vector<8x8xf32> to vector<1x8x8xf32>
    tpu.vector_store %arg4[%c0_55, %c0_56, %c8], %83 {strides = array<i32>} : memref<1x8x32xf32, #tpu.memory_space<vmem>>, vector<1x8x8xf32>,
    %84 = vector.extract_strided_slice %73 {offsets = [2, 0, 0], sizes = [1, 8, 8], strides = [1, 1, 1]} : vector<4x8x8xf32> to vector<1x8x8xf32>
    %85 = vector.shape_cast %84 : vector<1x8x8xf32> to vector<8x8xf32>
    %c0_57 = arith.constant 0 : index
    %c0_58 = arith.constant 0 : index
    %c16 = arith.constant 16 : index
    %86 = vector.load %arg4[%c0_57, %c0_58, %c16] : memref<1x8x32xf32, #tpu.memory_space<vmem>>, vector<1x8x8xf32>
    %87 = vector.shape_cast %86 : vector<1x8x8xf32> to vector<8x8xf32>
    %88 = vector.shape_cast %85 : vector<8x8xf32> to vector<1x8x8xf32>
    tpu.vector_store %arg4[%c0_57, %c0_58, %c16], %88 {strides = array<i32>} : memref<1x8x32xf32, #tpu.memory_space<vmem>>, vector<1x8x8xf32>,
    %89 = vector.extract_strided_slice %73 {offsets = [3, 0, 0], sizes = [1, 8, 8], strides = [1, 1, 1]} : vector<4x8x8xf32> to vector<1x8x8xf32>
    %90 = vector.shape_cast %89 : vector<1x8x8xf32> to vector<8x8xf32>
    %c0_59 = arith.constant 0 : index
    %c0_60 = arith.constant 0 : index
    %c24 = arith.constant 24 : index
    %91 = vector.load %arg4[%c0_59, %c0_60, %c24] : memref<1x8x32xf32, #tpu.memory_space<vmem>>, vector<1x8x8xf32>
    %92 = vector.shape_cast %91 : vector<1x8x8xf32> to vector<8x8xf32>
    %93 = vector.shape_cast %90 : vector<8x8xf32> to vector<1x8x8xf32>
    tpu.vector_store %arg4[%c0_59, %c0_60, %c24], %93 {strides = array<i32>} : memref<1x8x32xf32, #tpu.memory_space<vmem>>, vector<1x8x8xf32>,
    return
  }
  func.func @transform_0(%arg0: i32) -> (i32, i32, i32) {
    %c0_i32 = arith.constant 0 : i32
    %c0_i32_0 = arith.constant 0 : i32
    %c0_i32_1 = arith.constant 0 : i32
    return %arg0, %c0_i32, %c0_i32_0 : i32, i32, i32
  }
  func.func @transform_1(%arg0: i32) -> (i32, i32) {
    %c0_i32 = arith.constant 0 : i32
    %c0_i32_0 = arith.constant 0 : i32
    %c0_i32_1 = arith.constant 0 : i32
    return %c0_i32, %c0_i32_0 : i32, i32
  }
  func.func @transform_2(%arg0: i32) -> (i32, i32) {
    %c0_i32 = arith.constant 0 : i32
    %c0_i32_0 = arith.constant 0 : i32
    %c0_i32_1 = arith.constant 0 : i32
    return %c0_i32, %c0_i32_0 : i32, i32
  }
  func.func @transform_3(%arg0: i32) -> (i32, i32, i32) {
    %c0_i32 = arith.constant 0 : i32
    %c0_i32_0 = arith.constant 0 : i32
    %c0_i32_1 = arith.constant 0 : i32
    return %arg0, %c0_i32, %c0_i32_0 : i32, i32, i32
  }
}

</mosaic_0001>

<llo_original>
// kernel: attention_forward.1
$region0: #{attention_forward.1}
  #allocation0 [shape = 'u32[]', space=smem, size = 0x4, offset = 0x4, fixed_abs, tag = 'smem constant byte address 0x4 - core index']
  #allocation1 [shape = 'u32[144,128]{1,0:T(1,128)}', space=vmem, size = 0x12000, scoped, tag = 'internal scratch']
  #allocation2 [shape = 'f32[4,8,8]{2,1,0:T(8,128)}', space=vmem, size = 0x4000, scoped, tag = 'scratch operand']
  #allocation3 [shape = 'f32[4,8,8]{2,1,0:T(8,128)}', space=vmem, size = 0x4000, scoped, tag = 'scratch operand']
  #allocation4 [shape = 'f32[4,8,8]{2,1,0:T(8,128)}', space=vmem, size = 0x4000, scoped, tag = 'scratch operand']
  %s0 = inlined_call_operand.vmem [shape: bf16[2,8,32], index: 0, kind: input, shape index: {}]
  %s1 = inlined_call_operand.vmem [shape: bf16[32,96], index: 1, kind: input, shape index: {}]
  %s2 = inlined_call_operand.vmem [shape: f32[1,96], index: 2, kind: input, shape index: {}]
  %s3 = inlined_call_operand.hbm [shape: f32[2,8,32], index: 3, kind: output, shape index: {}]
  %s4 = sld [smem:[#allocation0]]
  $region45: #{attention_forward.1} parent=0
    _
  %s6 = ssub.s32 1, %s4
  %s7 = scalar_select 0, %s6, %s4
  $region1: #{attention_forward.1} parent=0
    #allocation5 [shape = 'u8[8192]{0}', space=vmem, size = 0x2000, scoped, tag = 'output window, operand 0']
    #allocation6 [shape = 's32[2]{0}', space=sflag, size = 0x8, scoped, tag = 'scoped memory for attention_forward.1']
    %8 = vsyncpa [#allocation6], 0
    %s9 = scalar_lea.sflag [#allocation6], 1
    %10 = vsyncpa %s9, 0
    loop: start=0, step=1, limit=4
    $region2: #{attention_forward.1} parent=1 // loop_pre_header
      _
    $region3: #{attention_forward.1} parent=1 // loop_header
      %s12 = sphi 0, %s16
      %p13 = scmp.ge.s32.totalorder %s12, 4
      %s22 = sphi 0, %s24
      %s25 = sphi 0, %s22
      %s26 = sphi 0, %s25
      %s42 = sphi 0, %s26
      %s46 = sphi 0, %s46
      %s48 = sphi 0, %s46
      %s49 = sphi 0, %s48
      %s63 = sphi 0, %s49
      %s67 = sphi 0, %s67
      %s69 = sphi 0, %s67
      %s70 = sphi 0, %s69
      %s84 = sphi 0, %s70
      %s90 = sphi 0, %s92
      %s93 = sphi 0, %s90
      %s94 = sphi 0, %s93
      %s110 = sphi 0, %s94
    $region4: #{attention_forward.1} parent=1 // loop_header_branch
      %15 = sbr.rel (%p13) target = $region8
    $region5: #{attention_forward.1} parent=1 // loop_body
      %s17 = ssub.s32 %s12, 1
      %s18 = ssub.s32 %s12, 2
      %s19 = sadd.s32 %s12, 1
      %s20 = ssub.s32 %s12, %s19
      %p21 = scmp.eq.s32.totalorder %s20, 0
      %s23 = sadd.s32 %s22, 1
      %s24 = scalar_select %p21, %s22, %s23
      %p27 = pneg %p21
      %p28 = scmp.eq.s32.totalorder %s12, 1
      %p29 = por %p27, %p28
      %p30 = scmp.ne.s32.totalorder %s22, %s25
      %p31 = scmp.eq.s32.totalorder %s12, 0
      %p32 = por %p30, %p31
      %p33 = scmp.ne.s32.totalorder %s22, %s25
      %p34 = scmp.eq.s32.totalorder %s17, 1
      %p35 = por %p33, %p34
      %p36 = scmp.ne.s32.totalorder %s25, %s26
      %p37 = scmp.eq.s32.totalorder %s17, 0
      %p38 = por %p36, %p37
      %p39 = scmp.ne.s32.totalorder %s25, %s26
      %p40 = scmp.eq.s32.totalorder %s18, 1
      %p41 = por %p39, %p40
      %p43 = scmp.ne.s32.totalorder %s26, %s42
      %p44 = scmp.eq.s32.totalorder %s18, 0
      %p45 = por %p43, %p44
      %s47 = sadd.s32 %s46, 1
      %p50 = scmp.eq.s32.totalorder %s12, 1
      %p51 = scmp.ne.s32.totalorder %s46, %s48
      %p52 = scmp.eq.s32.totalorder %s12, 0
      %p53 = por %p51, %p52
      %p54 = scmp.ne.s32.totalorder %s46, %s48
      %p55 = scmp.eq.s32.totalorder %s17, 1
      %p56 = por %p54, %p55
      %p57 = scmp.ne.s32.totalorder %s48, %s49
      %p58 = scmp.eq.s32.totalorder %s17, 0
      %p59 = por %p57, %p58
      %p60 = scmp.ne.s32.totalorder %s48, %s49
      %p61 = scmp.eq.s32.totalorder %s18, 1
      %p62 = por %p60, %p61
      %p64 = scmp.ne.s32.totalorder %s49, %s63
      %p65 = scmp.eq.s32.totalorder %s18, 0
      %p66 = por %p64, %p65
      %s68 = sadd.s32 %s67, 1
      %p71 = scmp.eq.s32.totalorder %s12, 1
      %p72 = scmp.ne.s32.totalorder %s67, %s69
      %p73 = scmp.eq.s32.totalorder %s12, 0
      %p74 = por %p72, %p73
      %p75 = scmp.ne.s32.totalorder %s67, %s69
      %p76 = scmp.eq.s32.totalorder %s17, 1
      %p77 = por %p75, %p76
      %p78 = scmp.ne.s32.totalorder %s69, %s70
      %p79 = scmp.eq.s32.totalorder %s17, 0
      %p80 = por %p78, %p79
      %p81 = scmp.ne.s32.totalorder %s69, %s70
      %p82 = scmp.eq.s32.totalorder %s18, 1
      %p83 = por %p81, %p82
      %p85 = scmp.ne.s32.totalorder %s70, %s84
      %p86 = scmp.eq.s32.totalorder %s18, 0
      %p87 = por %p85, %p86
      %s88 = ssub.s32 %s12, %s19
      %p89 = scmp.eq.s32.totalorder %s88, 0
      %s91 = sadd.s32 %s90, 1
      %s92 = scalar_select %p89, %s90, %s91
      %p95 = pneg %p89
      %p96 = scmp.eq.s32.totalorder %s12, 1
      %p97 = por %p95, %p96
      %p98 = scmp.ne.s32.totalorder %s90, %s93
      %p99 = scmp.eq.s32.totalorder %s12, 0
      %p100 = por %p98, %p99
      %p101 = scmp.ne.s32.totalorder %s90, %s93
      %p102 = scmp.eq.s32.totalorder %s17, 1
      %p103 = por %p101, %p102
      %p104 = scmp.ne.s32.totalorder %s93, %s94
      %p105 = scmp.eq.s32.totalorder %s17, 0
      %p106 = por %p104, %p105
      %p107 = scmp.ne.s32.totalorder %s93, %s94
      %p108 = scmp.eq.s32.totalorder %s18, 1
      %p109 = por %p107, %p108
      %p111 = scmp.ne.s32.totalorder %s94, %s110
      %p112 = scmp.eq.s32.totalorder %s18, 0
      %p113 = por %p111, %p112
      %p114 = scmp.le.s32.totalorder 1, %s12
      %p115 = scmp.lt.s32.totalorder %s12, 3
      %p116 = pnand %p114, %p115
      %p117 = pneg %p116
      // Predicated region
      $region9: #{attention_forward.1} parent=5 // pred_check
        _
      $region10: #{attention_forward.1} parent=5 // pred_check_branch
        %119 = sbr.rel (%p116) target = $region12
      $region11: #{attention_forward.1} parent=5 // pred_region
        %s120 = ssub.s32 %s12, 1
        // Predicated region
        $region13: #{attention_forward.1} parent=11 // pred_check
          %p121 = pneg %p59
        $region14: #{attention_forward.1} parent=11 // pred_check_branch
          %123 = sbr.rel (%p121) target = $region16
        $region15: #{attention_forward.1} parent=11 // pred_region
          _
        $region16: #{attention_forward.1} parent=11 // pred_fallthru
          _
        // Predicated region
        $region17: #{attention_forward.1} parent=11 // pred_check
          %p124 = pneg %p80
        $region18: #{attention_forward.1} parent=11 // pred_check_branch
          %126 = sbr.rel (%p124) target = $region20
        $region19: #{attention_forward.1} parent=11 // pred_region
          _
        $region20: #{attention_forward.1} parent=11 // pred_fallthru
          _
      $region12: #{attention_forward.1} parent=5 // pred_fallthru
        _
      %p127 = scmp.lt.s32.totalorder %s12, 2
      // Predicated region
      $region21: #{attention_forward.1} parent=5 // pred_check
        %p128 = pneg %p127
      $region22: #{attention_forward.1} parent=5 // pred_check_branch
        %130 = sbr.rel (%p128) target = $region24
      $region23: #{attention_forward.1} parent=5 // pred_region
        // Predicated region
        $region25: #{attention_forward.1} parent=23 // pred_check
          %p131 = pneg %p32
        $region26: #{attention_forward.1} parent=23 // pred_check_branch
          %133 = sbr.rel (%p131) target = $region28
        $region27: #{attention_forward.1} parent=23 // pred_region
          %p134 = scmp.lt.s32.totalorder %s12, 1
          %s135 = scalar_select %p134, %s12, 1
          %s136 = smul.addr %s135, 4
          %s137 = scalar_lea.vmem %s0, %s136
        $region28: #{attention_forward.1} parent=23 // pred_fallthru
          _
      $region24: #{attention_forward.1} parent=5 // pred_fallthru
        _
      %p138 = scmp.le.s32.totalorder 1, %s12
      %p139 = scmp.lt.s32.totalorder %s12, 3
      %p140 = pnand %p138, %p139
      %p141 = pneg %p140
      // Predicated region
      $region29: #{attention_forward.1} parent=5 // pred_check
        _
      $region30: #{attention_forward.1} parent=5 // pred_check_branch
        %143 = sbr.rel (%p140) target = $region32
      $region31: #{attention_forward.1} parent=5 // pred_region
        %s144 = ssub.s32 %s12, 1
        %p145 = scmp.lt.s32.totalorder %s17, 1
        %s146 = scalar_select %p145, %s17, 1
        %s147 = smul.addr %s146, 4
        %s148 = scalar_lea.vmem %s0, %s147
        %p149 = pneg %p38
        %p150 = pneg %p35
        %p151 = pneg %p59
        %p152 = pneg %p56
        %p153 = pneg %p80
        %p154 = pneg %p77
        %p155 = pneg %p106
        %p156 = pneg %p103
        %s157 = sand.u32 %s93, 1
        %s158 = scalar_lea.sflag [#allocation6], %s157
        %s159 = sand.u32 %s93, 1
        %s160 = smul.addr %s159, 8
        %s161 = scalar_lea.vmem [#allocation5], %s160
        %p162 = scmp.lt.s32.totalorder %s17, 1
        %s163 = scalar_select %p162, %s17, 1
        %s164 = smul.addr %s163, 4
        %s165 = scalar_lea.vmem %s0, %s164
        %v167 = vld [vmem:[%s165] sm:$0xf]
        %v168 = vld [vmem:[%s1] sm:$0xf]
        %v169 = vld [vmem:[%s1 + $0x4] sm:$0xf]
        %v170 = vld [vmem:[%s1 + $0x8] sm:$0xf]
        %v171 = vld [vmem:[%s1 + $0xc] sm:$0xf]
        %v172 = vld [vmem:[%s2] sm:$0x1]
        %v174 = vlaneseq
        %v175 = vshrl.u32 %v174, 7
        %v176 = vsub.s32 0, %v175
        %v177 = vrot.slane %v172, %v176
        %v183 = vunpack.c.l.b16 %v168
        %v184 = vunpack.c.l.b16 %v169
        %v185 = vunpack.c.l.b16 %v170
        %v186 = vunpack.c.l.b16 %v171
        %v187 = vpack.c.b16 %v184, %v183
        %v188 = vpack.c.b16 %v186, %v185
        %vm191 = vcmask 261120
        %v193 = vsel %vm191, %v167, 0
        %195 = vmatprep.subr.bf16.mxu0 0
        %196 = vmatpush1.bf16.msra.mxu0 %v187
        %197 = vmatprep.subr.bf16.mxu0 0
        %198 = vmatpush1.bf16.msra.mxu0 %v188
        %199 = vmatprep.subr.bf16.mxu0 0
        %200 = vmatpush1.bf16.msra.mxu0 0
        %201 = vmatprep.subr.bf16.mxu0 0
        %202 = vmatpush1.bf16.msra.mxu0 0
        %203 = vmatprep.subr.bf16.mxu0 0
        %204 = vmatpush1.bf16.msra.mxu0 0
        %205 = vmatprep.subr.bf16.mxu0 0
        %206 = vmatpush1.bf16.msra.mxu0 0
        %207 = vmatprep.subr.bf16.mxu0 0
        %208 = vmatpush1.bf16.msra.mxu0 0
        %209 = vmatprep.subr.bf16.mxu0 0
        %210 = vmatpush1.bf16.msra.mxu0 0
        %211 = vmatprep.subr.bf16.mxu0 0
        %212 = vmatpush1.bf16.msra.mxu0 0
        %213 = vmatprep.subr.bf16.mxu0 0
        %214 = vmatpush1.bf16.msra.mxu0 0
        %215 = vmatprep.subr.bf16.mxu0 0
        %216 = vmatpush1.bf16.msra.mxu0 0
        %217 = vmatprep.subr.bf16.mxu0 0
        %218 = vmatpush1.bf16.msra.mxu0 0
        %219 = vmatprep.subr.bf16.mxu0 0
        %220 = vmatpush1.bf16.msra.mxu0 0
        %221 = vmatprep.subr.bf16.mxu0 0
        %222 = vmatpush1.bf16.msra.mxu0 0
        %223 = vmatprep.subr.bf16.mxu0 0
        %224 = vmatpush1.bf16.msra.mxu0 0
        %225 = vmatprep.subr.bf16.mxu0 0
        %226 = vmatpush1.bf16.msra.mxu0 0
        %227 = vmatprep.mubr.bf16.mxu0 0
        %228 = vmatmul.mubr.bf16.gmra.mrb[0].mxu0 %v193
        %v229 = vpop.f32.mrb[0].mxu0
        %v230 = vadd.f32 %v177, %v229
        %v231 = vpop.f32.mrb[0].mxu0
        %v232 = vpop.f32.mrb[0].mxu0
        %v233 = vpop.f32.mrb[0].mxu0
        %234 = vdwg.mxu0
        %vm235 = vcmask 64512
        %236 = vst.msk [vmem:[#allocation2] sm:$0xff] %vm235, %v230
        %238 = vrot.lane.b32.xlu0 %v230, 96
        %v239 = vpop.permute.xlu0 %238
        %241 = vst.msk [vmem:[#allocation3] sm:$0xff] %vm235, %v239
        %242 = vrot.lane.b32.xlu0 %v230, 64
        %v243 = vpop.permute.xlu0 %242
        %245 = vst.msk [vmem:[#allocation4] sm:$0xff] %vm235, %v243
        %246 = vrot.lane.b32.xlu0 %v230, 120
        %v247 = vpop.permute.xlu0 %246
        %s249 = scalar_lea.vmem [#allocation2], 8
        %250 = vst.msk [vmem:[%s249] sm:$0xff] %vm235, %v247
        %251 = vrot.lane.b32.xlu0 %v230, 88
        %v252 = vpop.permute.xlu0 %251
        %s254 = scalar_lea.vmem [#allocation3], 8
        %255 = vst.msk [vmem:[%s254] sm:$0xff] %vm235, %v252
        %256 = vrot.lane.b32.xlu0 %v230, 56
        %v257 = vpop.permute.xlu0 %256
        %s259 = scalar_lea.vmem [#allocation4], 8
        %260 = vst.msk [vmem:[%s259] sm:$0xff] %vm235, %v257
        %261 = vrot.lane.b32.xlu0 %v230, 112
        %v262 = vpop.permute.xlu0 %261
        %s264 = scalar_lea.vmem [#allocation2], 16
        %265 = vst.msk [vmem:[%s264] sm:$0xff] %vm235, %v262
        %266 = vrot.lane.b32.xlu0 %v230, 80
        %v267 = vpop.permute.xlu0 %266
        %s269 = scalar_lea.vmem [#allocation3], 16
        %270 = vst.msk [vmem:[%s269] sm:$0xff] %vm235, %v267
        %271 = vrot.lane.b32.xlu0 %v230, 48
        %v272 = vpop.permute.xlu0 %271
        %s274 = scalar_lea.vmem [#allocation4], 16
        %275 = vst.msk [vmem:[%s274] sm:$0xff] %vm235, %v272
        %276 = vrot.lane.b32.xlu0 %v230, 104
        %v277 = vpop.permute.xlu0 %276
        %s279 = scalar_lea.vmem [#allocation2], 24
        %280 = vst.msk [vmem:[%s279] sm:$0xff] %vm235, %v277
        %281 = vrot.lane.b32.xlu0 %v230, 72
        %v282 = vpop.permute.xlu0 %281
        %s284 = scalar_lea.vmem [#allocation3], 24
        %285 = vst.msk [vmem:[%s284] sm:$0xff] %vm235, %v282
        %286 = vrot.lane.b32.xlu0 %v230, 40
        %v287 = vpop.permute.xlu0 %286
        %s289 = scalar_lea.vmem [#allocation4], 24
        %290 = vst.msk [vmem:[%s289] sm:$0xff] %vm235, %v287
        %v291 = vld [vmem:[#allocation2] sm:$0xff]
        %v292 = vld [vmem:[#allocation2 + $0x8] sm:$0xff]
        %v293 = vld [vmem:[#allocation2 + $0x10] sm:$0xff]
        %v294 = vld [vmem:[#allocation2 + $0x18] sm:$0xff]
        %v295 = vpack.c.bf16 %v291, %v291
        %v296 = vpack.c.bf16 %v292, %v292
        %v297 = vpack.c.bf16 %v293, %v293
        %v298 = vpack.c.bf16 %v294, %v294
        %v299 = vld [vmem:[#allocation3] sm:$0xff]
        %v300 = vld [vmem:[#allocation3 + $0x8] sm:$0xff]
        %v301 = vld [vmem:[#allocation3 + $0x10] sm:$0xff]
        %v302 = vld [vmem:[#allocation3 + $0x18] sm:$0xff]
        %v303 = vpack.c.bf16 %v299, %v299
        %v304 = vpack.c.bf16 %v300, %v300
        %v305 = vpack.c.bf16 %v301, %v301
        %v306 = vpack.c.bf16 %v302, %v302
        %v307 = vld [vmem:[#allocation4] sm:$0xff]
        %v308 = vld [vmem:[#allocation4 + $0x8] sm:$0xff]
        %v309 = vld [vmem:[#allocation4 + $0x10] sm:$0xff]
        %v310 = vld [vmem:[#allocation4 + $0x18] sm:$0xff]
        %v311 = vpack.c.bf16 %v307, %v307
        %v312 = vpack.c.bf16 %v308, %v308
        %v313 = vpack.c.bf16 %v309, %v309
        %v314 = vpack.c.bf16 %v310, %v310
        %v316 = vsel %vm235, %v295, 0
        %v319 = vsel %vm235, %v303, 0
        %321 = vmatprep.subr.bf16.mxu0 0
        %322 = vmatpush1.bf16.xpose.msra.mxu0 %v319
        %323 = vmatprep.subr.bf16.mxu0 0
        %324 = vmatpush1.bf16.xpose.msra.mxu0 0
        %325 = vmatprep.subr.bf16.mxu0 0
        %326 = vmatpush1.bf16.xpose.msra.mxu0 0
        %327 = vmatprep.subr.bf16.mxu0 0
        %328 = vmatpush1.bf16.xpose.msra.mxu0 0
        %329 = vmatprep.subr.bf16.mxu0 0
        %330 = vmatpush1.bf16.xpose.msra.mxu0 0
        %331 = vmatprep.subr.bf16.mxu0 0
        %332 = vmatpush1.bf16.xpose.msra.mxu0 0
        %333 = vmatprep.subr.bf16.mxu0 0
        %334 = vmatpush1.bf16.xpose.msra.mxu0 0
        %335 = vmatprep.subr.bf16.mxu0 0
        %336 = vmatpush1.bf16.xpose.msra.mxu0 0
        %337 = vmatprep.subr.bf16.mxu0 0
        %338 = vmatpush1.bf16.xpose.msra.mxu0 0
        %339 = vmatprep.subr.bf16.mxu0 0
        %340 = vmatpush1.bf16.xpose.msra.mxu0 0
        %341 = vmatprep.subr.bf16.mxu0 0
        %342 = vmatpush1.bf16.xpose.msra.mxu0 0
        %343 = vmatprep.subr.bf16.mxu0 0
        %344 = vmatpush1.bf16.xpose.msra.mxu0 0
        %345 = vmatprep.subr.bf16.mxu0 0
        %346 = vmatpush1.bf16.xpose.msra.mxu0 0
        %347 = vmatprep.subr.bf16.mxu0 0
        %348 = vmatpush1.bf16.xpose.msra.mxu0 0
        %349 = vmatprep.subr.bf16.mxu0 0
        %350 = vmatpush1.bf16.xpose.msra.mxu0 0
        %351 = vmatprep.subr.bf16.mxu0 0
        %352 = vmatpush1.bf16.xpose.msra.mxu0 0
        %353 = vmatprep.mubr.bf16.mxu0 0
        %354 = vmatmul.mubr.bf16.gmra.mrb[0].mxu0 %v316
        %v355 = vpop.f32.mrb[0].mxu0
        %v356 = vadd.f32 0.0, %v355
        %v357 = vpop.f32.mrb[0].mxu0
        %v358 = vpop.f32.mrb[0].mxu0
        %v359 = vpop.f32.mrb[0].mxu0
        %360 = vdwg.mxu0
        %v362 = vsel %vm235, %v296, 0
        %v365 = vsel %vm235, %v304, 0
        %367 = vmatprep.subr.bf16.mxu0 0
        %368 = vmatpush1.bf16.xpose.msra.mxu0 %v365
        %369 = vmatprep.subr.bf16.mxu0 0
        %370 = vmatpush1.bf16.xpose.msra.mxu0 0
        %371 = vmatprep.subr.bf16.mxu0 0
        %372 = vmatpush1.bf16.xpose.msra.mxu0 0
        %373 = vmatprep.subr.bf16.mxu0 0
        %374 = vmatpush1.bf16.xpose.msra.mxu0 0
        %375 = vmatprep.subr.bf16.mxu0 0
        %376 = vmatpush1.bf16.xpose.msra.mxu0 0
        %377 = vmatprep.subr.bf16.mxu0 0
        %378 = vmatpush1.bf16.xpose.msra.mxu0 0
        %379 = vmatprep.subr.bf16.mxu0 0
        %380 = vmatpush1.bf16.xpose.msra.mxu0 0
        %381 = vmatprep.subr.bf16.mxu0 0
        %382 = vmatpush1.bf16.xpose.msra.mxu0 0
        %383 = vmatprep.subr.bf16.mxu0 0
        %384 = vmatpush1.bf16.xpose.msra.mxu0 0
        %385 = vmatprep.subr.bf16.mxu0 0
        %386 = vmatpush1.bf16.xpose.msra.mxu0 0
        %387 = vmatprep.subr.bf16.mxu0 0
        %388 = vmatpush1.bf16.xpose.msra.mxu0 0
        %389 = vmatprep.subr.bf16.mxu0 0
        %390 = vmatpush1.bf16.xpose.msra.mxu0 0
        %391 = vmatprep.subr.bf16.mxu0 0
        %392 = vmatpush1.bf16.xpose.msra.mxu0 0
        %393 = vmatprep.subr.bf16.mxu0 0
        %394 = vmatpush1.bf16.xpose.msra.mxu0 0
        %395 = vmatprep.subr.bf16.mxu0 0
        %396 = vmatpush1.bf16.xpose.msra.mxu0 0
        %397 = vmatprep.subr.bf16.mxu0 0
        %398 = vmatpush1.bf16.xpose.msra.mxu0 0
        %399 = vmatprep.mubr.bf16.mxu0 0
        %400 = vmatmul.mubr.bf16.gmra.mrb[0].mxu0 %v362
        %v401 = vpop.f32.mrb[0].mxu0
        %v402 = vadd.f32 0.0, %v401
        %v403 = vpop.f32.mrb[0].mxu0
        %v404 = vpop.f32.mrb[0].mxu0
        %v405 = vpop.f32.mrb[0].mxu0
        %406 = vdwg.mxu0
        %v408 = vsel %vm235, %v297, 0
        %v411 = vsel %vm235, %v305, 0
        %413 = vmatprep.subr.bf16.mxu0 0
        %414 = vmatpush1.bf16.xpose.msra.mxu0 %v411
        %415 = vmatprep.subr.bf16.mxu0 0
        %416 = vmatpush1.bf16.xpose.msra.mxu0 0
        %417 = vmatprep.subr.bf16.mxu0 0
        %418 = vmatpush1.bf16.xpose.msra.mxu0 0
        %419 = vmatprep.subr.bf16.mxu0 0
        %420 = vmatpush1.bf16.xpose.msra.mxu0 0
        %421 = vmatprep.subr.bf16.mxu0 0
        %422 = vmatpush1.bf16.xpose.msra.mxu0 0
        %423 = vmatprep.subr.bf16.mxu0 0
        %424 = vmatpush1.bf16.xpose.msra.mxu0 0
        %425 = vmatprep.subr.bf16.mxu0 0
        %426 = vmatpush1.bf16.xpose.msra.mxu0 0
        %427 = vmatprep.subr.bf16.mxu0 0
        %428 = vmatpush1.bf16.xpose.msra.mxu0 0
        %429 = vmatprep.subr.bf16.mxu0 0
        %430 = vmatpush1.bf16.xpose.msra.mxu0 0
        %431 = vmatprep.subr.bf16.mxu0 0
        %432 = vmatpush1.bf16.xpose.msra.mxu0 0
        %433 = vmatprep.subr.bf16.mxu0 0
        %434 = vmatpush1.bf16.xpose.msra.mxu0 0
        %435 = vmatprep.subr.bf16.mxu0 0
        %436 = vmatpush1.bf16.xpose.msra.mxu0 0
        %437 = vmatprep.subr.bf16.mxu0 0
        %438 = vmatpush1.bf16.xpose.msra.mxu0 0
        %439 = vmatprep.subr.bf16.mxu0 0
        %440 = vmatpush1.bf16.xpose.msra.mxu0 0
        %441 = vmatprep.subr.bf16.mxu0 0
        %442 = vmatpush1.bf16.xpose.msra.mxu0 0
        %443 = vmatprep.subr.bf16.mxu0 0
        %444 = vmatpush1.bf16.xpose.msra.mxu0 0
        %445 = vmatprep.mubr.bf16.mxu0 0
        %446 = vmatmul.mubr.bf16.gmra.mrb[0].mxu0 %v408
        %v447 = vpop.f32.mrb[0].mxu0
        %v448 = vadd.f32 0.0, %v447
        %v449 = vpop.f32.mrb[0].mxu0
        %v450 = vpop.f32.mrb[0].mxu0
        %v451 = vpop.f32.mrb[0].mxu0
        %452 = vdwg.mxu0
        %v454 = vsel %vm235, %v298, 0
        %v457 = vsel %vm235, %v306, 0
        %459 = vmatprep.subr.bf16.mxu0 0
        %460 = vmatpush1.bf16.xpose.msra.mxu0 %v457
        %461 = vmatprep.subr.bf16.mxu0 0
        %462 = vmatpush1.bf16.xpose.msra.mxu0 0
        %463 = vmatprep.subr.bf16.mxu0 0
        %464 = vmatpush1.bf16.xpose.msra.mxu0 0
        %465 = vmatprep.subr.bf16.mxu0 0
        %466 = vmatpush1.bf16.xpose.msra.mxu0 0
        %467 = vmatprep.subr.bf16.mxu0 0
        %468 = vmatpush1.bf16.xpose.msra.mxu0 0
        %469 = vmatprep.subr.bf16.mxu0 0
        %470 = vmatpush1.bf16.xpose.msra.mxu0 0
        %471 = vmatprep.subr.bf16.mxu0 0
        %472 = vmatpush1.bf16.xpose.msra.mxu0 0
        %473 = vmatprep.subr.bf16.mxu0 0
        %474 = vmatpush1.bf16.xpose.msra.mxu0 0
        %475 = vmatprep.subr.bf16.mxu0 0
        %476 = vmatpush1.bf16.xpose.msra.mxu0 0
        %477 = vmatprep.subr.bf16.mxu0 0
        %478 = vmatpush1.bf16.xpose.msra.mxu0 0
        %479 = vmatprep.subr.bf16.mxu0 0
        %480 = vmatpush1.bf16.xpose.msra.mxu0 0
        %481 = vmatprep.subr.bf16.mxu0 0
        %482 = vmatpush1.bf16.xpose.msra.mxu0 0
        %483 = vmatprep.subr.bf16.mxu0 0
        %484 = vmatpush1.bf16.xpose.msra.mxu0 0
        %485 = vmatprep.subr.bf16.mxu0 0
        %486 = vmatpush1.bf16.xpose.msra.mxu0 0
        %487 = vmatprep.subr.bf16.mxu0 0
        %488 = vmatpush1.bf16.xpose.msra.mxu0 0
        %489 = vmatprep.subr.bf16.mxu0 0
        %490 = vmatpush1.bf16.xpose.msra.mxu0 0
        %491 = vmatprep.mubr.bf16.mxu0 0
        %492 = vmatmul.mubr.bf16.gmra.mrb[0].mxu0 %v454
        %v493 = vpop.f32.mrb[0].mxu0
        %v494 = vadd.f32 0.0, %v493
        %v495 = vpop.f32.mrb[0].mxu0
        %v496 = vpop.f32.mrb[0].mxu0
        %v497 = vpop.f32.mrb[0].mxu0
        %498 = vdwg.mxu0
        %v499 = vsel %vm235, %v356, -inf
        %500 = vmax.xlane.f32.xlu0 %v499
        %v501 = vpop.xlane.xlu0 %500
        %v502 = vsel %vm235, %v402, -inf
        %503 = vmax.xlane.f32.xlu0 %v502
        %v504 = vpop.xlane.xlu0 %503
        %v505 = vsel %vm235, %v448, -inf
        %506 = vmax.xlane.f32.xlu0 %v505
        %v507 = vpop.xlane.xlu0 %506
        %v508 = vsel %vm235, %v494, -inf
        %509 = vmax.xlane.f32.xlu0 %v508
        %v510 = vpop.xlane.xlu0 %509
        %v511 = vsub.f32 %v356, %v501
        %v512 = vsub.f32 %v402, %v504
        %v513 = vsub.f32 %v448, %v507
        %v514 = vsub.f32 %v494, %v510
        %v515 = vmul.f32 %v511, 1.442695
        %v516 = vpow.pop %v515
        %v517 = vmul.f32 %v512, 1.442695
        %v518 = vpow.pop %v517
        %v519 = vmul.f32 %v513, 1.442695
        %v520 = vpow.pop %v519
        %v521 = vmul.f32 %v514, 1.442695
        %v522 = vpow.pop %v521
        %v523 = vsel %vm235, %v516, 0.0
        %524 = vadd.xlane.f32.xlu0 %v523
        %v525 = vpop.xlane.xlu0 %524
        %v526 = vsel %vm235, %v518, 0.0
        %527 = vadd.xlane.f32.xlu0 %v526
        %v528 = vpop.xlane.xlu0 %527
        %v529 = vsel %vm235, %v520, 0.0
        %530 = vadd.xlane.f32.xlu0 %v529
        %v531 = vpop.xlane.xlu0 %530
        %v532 = vsel %vm235, %v522, 0.0
        %533 = vadd.xlane.f32.xlu0 %v532
        %v534 = vpop.xlane.xlu0 %533
        %v535 = vpack.c.bf16 %v516, %v516
        %v536 = vpack.c.bf16 %v518, %v518
        %v537 = vpack.c.bf16 %v520, %v520
        %v538 = vpack.c.bf16 %v522, %v522
        %v540 = vsel %vm235, %v535, 0
        %vm542 = vcmask 1043456
        %v544 = vsel %vm542, %v311, 0
        %546 = vmatprep.subr.bf16.mxu0 0
        %547 = vmatpush1.bf16.msra.mxu0 %v544
        %548 = vmatprep.subr.bf16.mxu0 0
        %549 = vmatpush1.bf16.msra.mxu0 0
        %550 = vmatprep.subr.bf16.mxu0 0
        %551 = vmatpush1.bf16.msra.mxu0 0
        %552 = vmatprep.subr.bf16.mxu0 0
        %553 = vmatpush1.bf16.msra.mxu0 0
        %554 = vmatprep.subr.bf16.mxu0 0
        %555 = vmatpush1.bf16.msra.mxu0 0
        %556 = vmatprep.subr.bf16.mxu0 0
        %557 = vmatpush1.bf16.msra.mxu0 0
        %558 = vmatprep.subr.bf16.mxu0 0
        %559 = vmatpush1.bf16.msra.mxu0 0
        %560 = vmatprep.subr.bf16.mxu0 0
        %561 = vmatpush1.bf16.msra.mxu0 0
        %562 = vmatprep.subr.bf16.mxu0 0
        %563 = vmatpush1.bf16.msra.mxu0 0
        %564 = vmatprep.subr.bf16.mxu0 0
        %565 = vmatpush1.bf16.msra.mxu0 0
        %566 = vmatprep.subr.bf16.mxu0 0
        %567 = vmatpush1.bf16.msra.mxu0 0
        %568 = vmatprep.subr.bf16.mxu0 0
        %569 = vmatpush1.bf16.msra.mxu0 0
        %570 = vmatprep.subr.bf16.mxu0 0
        %571 = vmatpush1.bf16.msra.mxu0 0
        %572 = vmatprep.subr.bf16.mxu0 0
        %573 = vmatpush1.bf16.msra.mxu0 0
        %574 = vmatprep.subr.bf16.mxu0 0
        %575 = vmatpush1.bf16.msra.mxu0 0
        %576 = vmatprep.subr.bf16.mxu0 0
        %577 = vmatpush1.bf16.msra.mxu0 0
        %578 = vmatprep.mubr.bf16.mxu0 0
        %579 = vmatmul.mubr.bf16.gmra.mrb[0].mxu0 %v540
        %v580 = vpop.f32.mrb[0].mxu0
        %v581 = vadd.f32 0.0, %v580
        %v582 = vpop.f32.mrb[0].mxu0
        %v583 = vpop.f32.mrb[0].mxu0
        %v584 = vpop.f32.mrb[0].mxu0
        %585 = vdwg.mxu0
        %v587 = vsel %vm235, %v536, 0
        %v590 = vsel %vm542, %v312, 0
        %592 = vmatprep.subr.bf16.mxu0 0
        %593 = vmatpush1.bf16.msra.mxu0 %v590
        %594 = vmatprep.subr.bf16.mxu0 0
        %595 = vmatpush1.bf16.msra.mxu0 0
        %596 = vmatprep.subr.bf16.mxu0 0
        %597 = vmatpush1.bf16.msra.mxu0 0
        %598 = vmatprep.subr.bf16.mxu0 0
        %599 = vmatpush1.bf16.msra.mxu0 0
        %600 = vmatprep.subr.bf16.mxu0 0
        %601 = vmatpush1.bf16.msra.mxu0 0
        %602 = vmatprep.subr.bf16.mxu0 0
        %603 = vmatpush1.bf16.msra.mxu0 0
        %604 = vmatprep.subr.bf16.mxu0 0
        %605 = vmatpush1.bf16.msra.mxu0 0
        %606 = vmatprep.subr.bf16.mxu0 0
        %607 = vmatpush1.bf16.msra.mxu0 0
        %608 = vmatprep.subr.bf16.mxu0 0
        %609 = vmatpush1.bf16.msra.mxu0 0
        %610 = vmatprep.subr.bf16.mxu0 0
        %611 = vmatpush1.bf16.msra.mxu0 0
        %612 = vmatprep.subr.bf16.mxu0 0
        %613 = vmatpush1.bf16.msra.mxu0 0
        %614 = vmatprep.subr.bf16.mxu0 0
        %615 = vmatpush1.bf16.msra.mxu0 0
        %616 = vmatprep.subr.bf16.mxu0 0
        %617 = vmatpush1.bf16.msra.mxu0 0
        %618 = vmatprep.subr.bf16.mxu0 0
        %619 = vmatpush1.bf16.msra.mxu0 0
        %620 = vmatprep.subr.bf16.mxu0 0
        %621 = vmatpush1.bf16.msra.mxu0 0
        %622 = vmatprep.subr.bf16.mxu0 0
        %623 = vmatpush1.bf16.msra.mxu0 0
        %624 = vmatprep.mubr.bf16.mxu0 0
        %625 = vmatmul.mubr.bf16.gmra.mrb[0].mxu0 %v587
        %v626 = vpop.f32.mrb[0].mxu0
        %v627 = vadd.f32 0.0, %v626
        %v628 = vpop.f32.mrb[0].mxu0
        %v629 = vpop.f32.mrb[0].mxu0
        %v630 = vpop.f32.mrb[0].mxu0
        %631 = vdwg.mxu0
        %v633 = vsel %vm235, %v537, 0
        %v636 = vsel %vm542, %v313, 0
        %638 = vmatprep.subr.bf16.mxu0 0
        %639 = vmatpush1.bf16.msra.mxu0 %v636
        %640 = vmatprep.subr.bf16.mxu0 0
        %641 = vmatpush1.bf16.msra.mxu0 0
        %642 = vmatprep.subr.bf16.mxu0 0
        %643 = vmatpush1.bf16.msra.mxu0 0
        %644 = vmatprep.subr.bf16.mxu0 0
        %645 = vmatpush1.bf16.msra.mxu0 0
        %646 = vmatprep.subr.bf16.mxu0 0
        %647 = vmatpush1.bf16.msra.mxu0 0
        %648 = vmatprep.subr.bf16.mxu0 0
        %649 = vmatpush1.bf16.msra.mxu0 0
        %650 = vmatprep.subr.bf16.mxu0 0
        %651 = vmatpush1.bf16.msra.mxu0 0
        %652 = vmatprep.subr.bf16.mxu0 0
        %653 = vmatpush1.bf16.msra.mxu0 0
        %654 = vmatprep.subr.bf16.mxu0 0
        %655 = vmatpush1.bf16.msra.mxu0 0
        %656 = vmatprep.subr.bf16.mxu0 0
        %657 = vmatpush1.bf16.msra.mxu0 0
        %658 = vmatprep.subr.bf16.mxu0 0
        %659 = vmatpush1.bf16.msra.mxu0 0
        %660 = vmatprep.subr.bf16.mxu0 0
        %661 = vmatpush1.bf16.msra.mxu0 0
        %662 = vmatprep.subr.bf16.mxu0 0
        %663 = vmatpush1.bf16.msra.mxu0 0
        %664 = vmatprep.subr.bf16.mxu0 0
        %665 = vmatpush1.bf16.msra.mxu0 0
        %666 = vmatprep.subr.bf16.mxu0 0
        %667 = vmatpush1.bf16.msra.mxu0 0
        %668 = vmatprep.subr.bf16.mxu0 0
        %669 = vmatpush1.bf16.msra.mxu0 0
        %670 = vmatprep.mubr.bf16.mxu0 0
        %671 = vmatmul.mubr.bf16.gmra.mrb[0].mxu0 %v633
        %v672 = vpop.f32.mrb[0].mxu0
        %v673 = vadd.f32 0.0, %v672
        %v674 = vpop.f32.mrb[0].mxu0
        %v675 = vpop.f32.mrb[0].mxu0
        %v676 = vpop.f32.mrb[0].mxu0
        %677 = vdwg.mxu0
        %v679 = vsel %vm235, %v538, 0
        %v682 = vsel %vm542, %v314, 0
        %684 = vmatprep.subr.bf16.mxu0 0
        %685 = vmatpush1.bf16.msra.mxu0 %v682
        %686 = vmatprep.subr.bf16.mxu0 0
        %687 = vmatpush1.bf16.msra.mxu0 0
        %688 = vmatprep.subr.bf16.mxu0 0
        %689 = vmatpush1.bf16.msra.mxu0 0
        %690 = vmatprep.subr.bf16.mxu0 0
        %691 = vmatpush1.bf16.msra.mxu0 0
        %692 = vmatprep.subr.bf16.mxu0 0
        %693 = vmatpush1.bf16.msra.mxu0 0
        %694 = vmatprep.subr.bf16.mxu0 0
        %695 = vmatpush1.bf16.msra.mxu0 0
        %696 = vmatprep.subr.bf16.mxu0 0
        %697 = vmatpush1.bf16.msra.mxu0 0
        %698 = vmatprep.subr.bf16.mxu0 0
        %699 = vmatpush1.bf16.msra.mxu0 0
        %700 = vmatprep.subr.bf16.mxu0 0
        %701 = vmatpush1.bf16.msra.mxu0 0
        %702 = vmatprep.subr.bf16.mxu0 0
        %703 = vmatpush1.bf16.msra.mxu0 0
        %704 = vmatprep.subr.bf16.mxu0 0
        %705 = vmatpush1.bf16.msra.mxu0 0
        %706 = vmatprep.subr.bf16.mxu0 0
        %707 = vmatpush1.bf16.msra.mxu0 0
        %708 = vmatprep.subr.bf16.mxu0 0
        %709 = vmatpush1.bf16.msra.mxu0 0
        %710 = vmatprep.subr.bf16.mxu0 0
        %711 = vmatpush1.bf16.msra.mxu0 0
        %712 = vmatprep.subr.bf16.mxu0 0
        %713 = vmatpush1.bf16.msra.mxu0 0
        %714 = vmatprep.subr.bf16.mxu0 0
        %715 = vmatpush1.bf16.msra.mxu0 0
        %716 = vmatprep.mubr.bf16.mxu0 0
        %717 = vmatmul.mubr.bf16.gmra.mrb[0].mxu0 %v679
        %v718 = vpop.f32.mrb[0].mxu0
        %v719 = vadd.f32 0.0, %v718
        %v720 = vpop.f32.mrb[0].mxu0
        %v721 = vpop.f32.mrb[0].mxu0
        %v722 = vpop.f32.mrb[0].mxu0
        %723 = vdwg.mxu0
        %v724 = vrcp.pop %v525
        %v725 = vrcp.pop %v528
        %v726 = vrcp.pop %v531
        %v727 = vrcp.pop %v534
        %v728 = vmul.f32 %v581, %v724
        %v729 = vmul.f32 %v627, %v725
        %v730 = vmul.f32 %v673, %v726
        %v731 = vmul.f32 %v719, %v727
        %732 = vst.msk [vmem:[%s161] sm:$0xff] %vm235, %v728
        %734 = vrot.lane.b32.xlu0 %v729, 8
        %v735 = vpop.permute.xlu0 %734
        %vm737 = vcmask 130112
        %738 = vst.msk [vmem:[%s161] sm:$0xff] %vm737, %v735
        %740 = vrot.lane.b32.xlu0 %v730, 16
        %v741 = vpop.permute.xlu0 %740
        %vm743 = vcmask 195712
        %744 = vst.msk [vmem:[%s161] sm:$0xff] %vm743, %v741
        %746 = vrot.lane.b32.xlu0 %v731, 24
        %v747 = vpop.permute.xlu0 %746
        %vm749 = vcmask 261312
        %750 = vst.msk [vmem:[%s161] sm:$0xff] %vm749, %v747
        %s751 = sand.u32 %s93, 1
        %s752 = scalar_lea.sflag [#allocation6], %s751
        %s753 = sand.u32 %s93, 1
        %s754 = smul.addr %s753, 8
        %s755 = scalar_lea.vmem [#allocation5], %s754
        // Predicated region
        $region33: #{attention_forward.1} parent=31 // pred_check
          %p756 = pneg %p103
        $region34: #{attention_forward.1} parent=31 // pred_check_branch
          %758 = sbr.rel (%p756) target = $region36
        $region35: #{attention_forward.1} parent=31 // pred_region
          %s760 = ssub.s32 128, 128
          %761 = vsyncadd %s752, %s760
          %s762 = smul.addr %s17, 128
          %s763 = scalar_lea.hbm %s3, %s762
          %s765 = sshll.u32 %s755, 4
          %s766 = int_to_ptr.vmem [resolvable:$true] %s765
          %768 = dma.vmem_to_hbm [thread:$0]  %s766, 128, %s763, %s752
        $region36: #{attention_forward.1} parent=31 // pred_fallthru
          _
      $region32: #{attention_forward.1} parent=5 // pred_fallthru
        _
      %p769 = scmp.le.s32.totalorder 2, %s12
      // Predicated region
      $region37: #{attention_forward.1} parent=5 // pred_check
        %p770 = pneg %p769
      $region38: #{attention_forward.1} parent=5 // pred_check_branch
        %772 = sbr.rel (%p770) target = $region40
      $region39: #{attention_forward.1} parent=5 // pred_region
        %s773 = ssub.s32 %s12, 2
        // Predicated region
        $region41: #{attention_forward.1} parent=39 // pred_check
          %p774 = pneg %p109
        $region42: #{attention_forward.1} parent=39 // pred_check_branch
          %776 = sbr.rel (%p774) target = $region44
        $region43: #{attention_forward.1} parent=39 // pred_region
          %s777 = sand.u32 %s94, 1
          %s778 = scalar_lea.sflag [#allocation6], %s777
          %s779 = sand.u32 %s94, 1
          %s780 = smul.addr %s779, 8
          %s781 = scalar_lea.vmem [#allocation5], %s780
          %782 = dma.done %s778, 128
        $region44: #{attention_forward.1} parent=39 // pred_fallthru
          _
      $region40: #{attention_forward.1} parent=5 // pred_fallthru
        _
    $region6: #{attention_forward.1} parent=1 // loop_footer
      %s16 = sadd.s32 1, %s12
    $region7: #{attention_forward.1} parent=1 // loop_footer_branch
      %11 = sbr.rel target = $region3
    $region8: #{attention_forward.1} parent=1 // loop_exit
      _
    %783 = vsyncpa [#allocation6], 1
    %s784 = scalar_lea.sflag [#allocation6], 1
    %785 = vsyncpa %s784, 1

</llo_original>
